<compile_context>
chip_gen: v5e
topology: v5e:2x2
jax: 0.10.0
libtpu: 0.0.40
codegen_flags: <defaults>
</compile_context>

<pallas_src>
import numpy as np
import jax
import jax.numpy as jnp
from jax.experimental import pallas as pl
from jax.experimental.pallas import tpu as pltpu

POOL_SIZES = (1, 2, 4, 8)
REDUCTION_RATIO = 16
BN_EPS = 1e-5


def _round_up(x, m):
    return ((x + m - 1) // m) * m


# ----------------------------------------------------------------------------
# Glue: 1-D linear operators for adaptive avg-pool and bilinear upsample
# ----------------------------------------------------------------------------
def _adaptive_pool_matrix(out_size, in_size):
    """Row-stochastic [out, in] matrix matching nn.AdaptiveAvgPool2d (1-D)."""
    P = np.zeros((out_size, in_size), np.float32)
    for i in range(out_size):
        start = (i * in_size) // out_size
        end = -((-(i + 1) * in_size) // out_size)  # ceil((i+1)*in/out)
        P[i, start:end] = 1.0 / (end - start)
    return P


def _bilinear_matrix(out_size, in_size):
    """[out, in] matrix matching F.interpolate(bilinear, align_corners=False)."""
    M = np.zeros((out_size, in_size), np.float32)
    scale = in_size / out_size
    for h in range(out_size):
        src = max((h + 0.5) * scale - 0.5, 0.0)
        i0 = min(int(np.floor(src)), in_size - 1)
        i1 = min(i0 + 1, in_size - 1)
        w1 = src - i0
        M[h, i0] += 1.0 - w1
        M[h, i1] += w1
    return M


def _scale_operators(H, W):
    """Per-scale pooling [S, HW] and upsampling [HW, S] operators."""
    pools, interps = [], []
    for s in POOL_SIZES:
        pools.append(np.kron(_adaptive_pool_matrix(s, H), _adaptive_pool_matrix(s, W)))
        interps.append(np.kron(_bilinear_matrix(H, s), _bilinear_matrix(W, s)))
    return pools, interps


# ----------------------------------------------------------------------------
# Host-side operator stacking + weight folding
# ----------------------------------------------------------------------------
def _prepare_operands(H, W, C, params):
    r = params["w2"].shape[0]
    rp = _round_up(r, 8)                      # sublane-align the reduced channels
    HW = H * W
    HWp = _round_up(HW, 128)                  # lane-align the pixel axis
    sizes = [s * s for s in POOL_SIZES]
    stot = sum(sizes)                         # 85 for (1,2,4,8)
    SP = _round_up(stot, 128)                 # 128: one lane-dense pooled slab

    pools, interps = _scale_operators(H, W)
    P_all = np.concatenate(pools, axis=0)     # [stot, HW]
    M_all = np.concatenate(interps, axis=1)   # [HW, stot]

    pt = np.zeros((HWp, SP), np.float32)      # pooled = x[C,HWp] @ pt
    pt[:HW, :stot] = P_all.T
    mt = np.zeros((SP, HWp), np.float32)      # upsample = z[rp,SP] @ mt
    mt[:stot, :HW] = M_all.T

    # column mask: which stacked pooled positions belong to which scale
    mask = np.zeros((len(POOL_SIZES), SP), np.float32)
    off = 0
    for s_idx, n in enumerate(sizes):
        mask[s_idx, off:off + n] = 1.0
        off += n

    # Fold each per-scale 1x1 conv into the first fusion conv: Vc_s = Wc_s @ w1_s
    vct_blocks = []
    for s_idx in range(len(POOL_SIZES)):
        w1_s = params["w1"][s_idx * r:(s_idx + 1) * r, :]            # [r, r]
        vc = jnp.dot(params["wc"][s_idx], w1_s)                      # [C, r]
        vct_blocks.append(jnp.pad(vc.T, ((0, rp - r), (0, 0))))      # [rp, C]
    vct = jnp.concatenate(vct_blocks, axis=0).astype(jnp.float32)    # [4*rp, C]

    bn1s = jnp.pad(params["bn1_scale"], (0, rp - r)).reshape(rp, 1)
    bn1b = jnp.pad(params["bn1_shift"], (0, rp - r)).reshape(rp, 1)
    w2t = jnp.pad(params["w2"].T, ((0, 0), (0, rp - r)))             # [C, rp]
    bn2s = params["bn2_scale"].reshape(C, 1)
    bn2b = params["bn2_shift"].reshape(C, 1)

    return dict(
        pt=jnp.asarray(pt, jnp.bfloat16),     # bf16 MXU inputs, f32 accumulation
        mt=jnp.asarray(mt, jnp.bfloat16),
        vct=vct, mask=jnp.asarray(mask),
        bn1s=bn1s, bn1b=bn1b, w2t=w2t, bn2s=bn2s, bn2b=bn2b,
        HWp=HWp, SP=SP, rp=rp,
    )


# ----------------------------------------------------------------------------
# Pallas kernel
# ----------------------------------------------------------------------------
def scale_aware_attn_kernel(x_ref, pt_ref, mt_ref, vct_ref, mask_ref,
                            bn1s_ref, bn1b_ref, w2t_ref, bn2s_ref, bn2b_ref,
                            o_ref):
    bb, C, HWp = x_ref.shape
    NS, SP = mask_ref.shape
    rp = vct_ref.shape[0] // NS

    x = x_ref[...]                                     # [bb, C, HWp] f32

    # --- pooling of all scales & all batch rows in ONE lane-dense matmul ---
    xb = x.reshape(bb * C, HWp).astype(jnp.bfloat16)
    pooled = jnp.dot(xb, pt_ref[...],
                     preferred_element_type=jnp.float32)             # [bb*C, SP]

    mt = mt_ref[...]
    vct = vct_ref[...]
    mask = mask_ref[...]
    bn1s = bn1s_ref[...]
    bn1b = bn1b_ref[...]
    w2t = w2t_ref[...]
    bn2s = bn2s_ref[...]
    bn2b = bn2b_ref[...]

    for b in range(bb):                                # static, bb is small
        pooled_b = pooled[b * C:(b + 1) * C, :]        # [C, SP]

        # folded (per-scale 1x1 conv) @ (fusion conv1): [4*rp, C] @ [C, SP]
        zw = jnp.dot(vct, pooled_b, preferred_element_type=jnp.float32)  # [4*rp, SP]

        # each pooled position keeps its own scale's block (cheap masked adds)
        zsel = jnp.zeros((rp, SP), jnp.float32)
        for s in range(NS):
            zsel = zsel + zw[s * rp:(s + 1) * rp, :] * mask[s:s + 1, :]

        # bilinear upsample of all scales in ONE matmul: [rp, SP] @ [SP, HWp]
        h = jnp.dot(zsel.astype(jnp.bfloat16), mt,
                    preferred_element_type=jnp.float32)               # [rp, HWp]
        h = jnp.maximum(h * bn1s + bn1b, 0.0)          # BN1 (folded) + ReLU

        # second fusion conv + BN2 + sigmoid: [C, rp] @ [rp, HWp]
        a = jnp.dot(w2t, h, preferred_element_type=jnp.float32)       # [C, HWp]
        a = jax.nn.sigmoid(a * bn2s + bn2b)

        o_ref[b] = (x[b] * a).astype(o_ref.dtype)


# ----------------------------------------------------------------------------
# Wrapper
# ----------------------------------------------------------------------------
def _const_spec(shape):
    n = len(shape)
    return pl.BlockSpec(shape, lambda b, _n=n: (0,) * _n)


def scale_aware_attention(x_nchw, params, *, batch_block=None):
    """x_nchw: [B, C, H, W] float32 -> [B, C, H, W] float32 (matches the module)."""
    B, C, H, W = x_nchw.shape
    HW = H * W
    ops = _prepare_operands(H, W, C, params)
    HWp = ops["HWp"]

    # amortize per-grid-step overhead for small images
    if batch_block is None:
        bb = 1
        for cand in (8, 4, 2, 1):
            if cand <= B and B % cand == 0:
                bb = cand
                break
    else:
        bb = batch_block
        if B % bb != 0:
            raise ValueError("batch_block must divide the batch size")

    x = x_nchw.reshape(B, C, HW)
    if HWp != HW:
        x = jnp.pad(x, ((0, 0), (0, 0), (0, HWp - HW)))

    operands = (x, ops["pt"], ops["mt"], ops["vct"], ops["mask"],
                ops["bn1s"], ops["bn1b"], ops["w2t"], ops["bn2s"], ops["bn2b"])

    in_specs = ([pl.BlockSpec((bb, C, HWp), lambda b: (b, 0, 0))]
                + [_const_spec(op.shape) for op in operands[1:]])

    out = pl.pallas_call(
        scale_aware_attn_kernel,
        out_shape=jax.ShapeDtypeStruct((B, C, HWp), x.dtype),
        grid_spec=pltpu.PrefetchScalarGridSpec(
            num_scalar_prefetch=0,
            grid=(B // bb,),
            in_specs=in_specs,
            out_specs=pl.BlockSpec((bb, C, HWp), lambda b: (b, 0, 0)),
        ),
        compiler_params=pltpu.CompilerParams(
            dimension_semantics=("parallel",),
            vmem_limit_bytes=64 * 1024 * 1024,
        ),
    )(*operands)

    if HWp != HW:
        out = out[:, :, :HW]
    return out.reshape(B, C, H, W)


# ----------------------------------------------------------------------------
# Deterministic parameter init (synthetic weights; shapes from the nn.Module)
# ----------------------------------------------------------------------------
def init_params(key, in_channels, reduction_ratio=REDUCTION_RATIO):
    C = in_channels
    r = max(1, C // reduction_ratio)
    ks = jax.random.split(key, 12)

    # per-scale 1x1 convs: torch weight [r, C, 1, 1] stored transposed as [C, r]
    wc = [jax.random.normal(ks[i], (C, r), jnp.float32) / np.sqrt(C) for i in range(4)]
    # fusion conv1 [r, 4r, 1, 1] -> [4r, r];   fusion conv2 [C, r, 1, 1] -> [r, C]
    w1 = jax.random.normal(ks[4], (4 * r, r), jnp.float32) / np.sqrt(4 * r)
    w2 = jax.random.normal(ks[5], (r, C), jnp.float32) / np.sqrt(r)

    # BatchNorm (inference): fold gamma/beta/running stats into scale & shift
    g1 = 1.0 + 0.1 * jax.random.normal(ks[6], (r,), jnp.float32)
    b1 = 0.1 * jax.random.normal(ks[7], (r,), jnp.float32)
    rm1 = 0.1 * jax.random.normal(ks[8], (r,), jnp.float32)
    rv1 = 1.0 + 0.1 * jnp.abs(jax.random.normal(ks[9], (r,), jnp.float32))
    g2 = 1.0 + 0.1 * jax.random.normal(ks[10], (C,), jnp.float32)
    b2 = 0.1 * jax.random.normal(ks[11], (C,), jnp.float32)
    rm2 = jnp.zeros((C,), jnp.float32)
    rv2 = jnp.ones((C,), jnp.float32)

    s1 = g1 / jnp.sqrt(rv1 + BN_EPS)
    s2 = g2 / jnp.sqrt(rv2 + BN_EPS)
    return dict(
        wc=wc, w1=w1, w2=w2,
        bn1_scale=s1, bn1_shift=b1 - rm1 * s1,
        bn2_scale=s2, bn2_shift=b2 - rm2 * s2,
    )


# ----------------------------------------------------------------------------
# Pure-JAX f32 reference, UNFUSED (mirrors the PyTorch module step by step)
# ----------------------------------------------------------------------------
def reference_forward(x_nchw, params):
    B, C, H, W = x_nchw.shape
    HW = H * W
    x = x_nchw.reshape(B, C, HW)
    pools, interps = _scale_operators(H, W)
    ups = []
    for P, M, Wc in zip(pools, interps, params["wc"]):
        pooled = jnp.einsum("ph,bch->bcp", jnp.asarray(P), x)        # adaptive avg pool
        conv = jnp.einsum("bcp,cr->brp", pooled, Wc)                 # 1x1 conv
        ups.append(jnp.einsum("hp,brp->brh", jnp.asarray(M), conv))  # bilinear upsample
    feat = jnp.concatenate(ups, axis=1)                              # channel concat
    pre1 = jnp.einsum("bfh,fr->brh", feat, params["w1"])
    h = jnp.maximum(pre1 * params["bn1_scale"][None, :, None]
                    + params["bn1_shift"][None, :, None], 0.0)
    pre2 = jnp.einsum("brh,rc->bch", h, params["w2"])
    a = jax.nn.sigmoid(pre2 * params["bn2_scale"][None, :, None]
                       + params["bn2_shift"][None, :, None])
    return (x * a).reshape(B, C, H, W)


# ----------------------------------------------------------------------------
if __name__ == "__main__":
    key = jax.random.PRNGKey(0)
    kx, kp = jax.random.split(key)

    B, C, H, W = 2, 32, 16, 16          # r = max(1, 32 // 16) = 2 -> padded to 8
    x = jax.random.normal(kx, (B, C, H, W), jnp.float32)
    params = init_params(kp, C)

    out = jax.block_until_ready(scale_aware_attention(x, params))
    ref = jax.block_until_ready(reference_forward(x, params))

    assert out.shape == x.shape
    np.testing.assert_allclose(np.asarray(out), np.asarray(ref), rtol=2e-2, atol=2e-2)
    print("KERNEL_OK")
</pallas_src>

<mosaic_0001>
module attributes {stable_mosaic.version = 11 : i64} {
  func.func @scale_aware_attn_kernel(%arg0: i32, %arg1: memref<2x32x256xf32, #tpu.memory_space<vmem>>, %arg2: memref<256x128xbf16, #tpu.memory_space<vmem>>, %arg3: memref<128x256xbf16, #tpu.memory_space<vmem>>, %arg4: memref<32x32xf32, #tpu.memory_space<vmem>>, %arg5: memref<4x128xf32, #tpu.memory_space<vmem>>, %arg6: memref<8x1xf32, #tpu.memory_space<vmem>>, %arg7: memref<8x1xf32, #tpu.memory_space<vmem>>, %arg8: memref<32x8xf32, #tpu.memory_space<vmem>>, %arg9: memref<32x1xf32, #tpu.memory_space<vmem>>, %arg10: memref<32x1xf32, #tpu.memory_space<vmem>>, %arg11: memref<2x32x256xf32, #tpu.memory_space<vmem>>) attributes {dimension_semantics = [#tpu.dimension_semantics<parallel>], iteration_bounds = array<i64: 1>, scalar_prefetch = 0 : i64, scratch_operands = 0 : i64, tpu.core_type = #tpu.core_type<tc>, window_params = [{transform_indices = @transform_0, window_bounds = array<i64: 2, 32, 256>}, {pipeline_mode = #tpu.pipeline_mode<synchronous>, transform_indices = @transform_1, window_bounds = array<i64: 256, 128>}, {pipeline_mode = #tpu.pipeline_mode<synchronous>, transform_indices = @transform_2, window_bounds = array<i64: 128, 256>}, {pipeline_mode = #tpu.pipeline_mode<synchronous>, transform_indices = @transform_3, window_bounds = array<i64: 32, 32>}, {pipeline_mode = #tpu.pipeline_mode<synchronous>, transform_indices = @transform_4, window_bounds = array<i64: 4, 128>}, {pipeline_mode = #tpu.pipeline_mode<synchronous>, transform_indices = @transform_5, window_bounds = array<i64: 8, 1>}, {pipeline_mode = #tpu.pipeline_mode<synchronous>, transform_indices = @transform_6, window_bounds = array<i64: 8, 1>}, {pipeline_mode = #tpu.pipeline_mode<synchronous>, transform_indices = @transform_7, window_bounds = array<i64: 32, 8>}, {pipeline_mode = #tpu.pipeline_mode<synchronous>, transform_indices = @transform_8, window_bounds = array<i64: 32, 1>}, {pipeline_mode = #tpu.pipeline_mode<synchronous>, transform_indices = @transform_9, window_bounds = array<i64: 32, 1>}, {transform_indices = @transform_10, window_bounds = array<i64: 2, 32, 256>}]} {
    %c0 = arith.constant 0 : index
    %c0_0 = arith.constant 0 : index
    %c0_1 = arith.constant 0 : index
    %0 = vector.load %arg1[%c0, %c0_0, %c0_1] : memref<2x32x256xf32, #tpu.memory_space<vmem>>, vector<2x32x256xf32>
    %1 = vector.shape_cast %0 : vector<2x32x256xf32> to vector<64x256xf32>
    %2 = arith.truncf %1 : vector<64x256xf32> to vector<64x256xbf16>
    %c0_2 = arith.constant 0 : index
    %c0_3 = arith.constant 0 : index
    %3 = vector.load %arg2[%c0_2, %c0_3] : memref<256x128xbf16, #tpu.memory_space<vmem>>, vector<256x128xbf16>
    %cst = arith.constant dense<0.000000e+00> : vector<64x128xf32>
    %4 = tpu.matmul %2, %3, %cst {dimension_numbers = #tpu.dot_dimension_numbers<[1], [0], [0], [1], [0, 0, 1, 1], [], []>} : vector<64x256xbf16>, vector<256x128xbf16>, vector<64x128xf32> -> vector<64x128xf32>
    %c0_4 = arith.constant 0 : index
    %c0_5 = arith.constant 0 : index
    %5 = vector.load %arg3[%c0_4, %c0_5] : memref<128x256xbf16, #tpu.memory_space<vmem>>, vector<128x256xbf16>
    %c0_6 = arith.constant 0 : index
    %c0_7 = arith.constant 0 : index
    %6 = vector.load %arg4[%c0_6, %c0_7] : memref<32x32xf32, #tpu.memory_space<vmem>>, vector<32x32xf32>
    %c0_8 = arith.constant 0 : index
    %c0_9 = arith.constant 0 : index
    %7 = vector.load %arg5[%c0_8, %c0_9] : memref<4x128xf32, #tpu.memory_space<vmem>>, vector<4x128xf32>
    %c0_10 = arith.constant 0 : index
    %c0_11 = arith.constant 0 : index
    %8 = vector.load %arg6[%c0_10, %c0_11] : memref<8x1xf32, #tpu.memory_space<vmem>>, vector<8x1xf32>
    %c0_12 = arith.constant 0 : index
    %c0_13 = arith.constant 0 : index
    %9 = vector.load %arg7[%c0_12, %c0_13] : memref<8x1xf32, #tpu.memory_space<vmem>>, vector<8x1xf32>
    %c0_14 = arith.constant 0 : index
    %c0_15 = arith.constant 0 : index
    %10 = vector.load %arg8[%c0_14, %c0_15] : memref<32x8xf32, #tpu.memory_space<vmem>>, vector<32x8xf32>
    %c0_16 = arith.constant 0 : index
    %c0_17 = arith.constant 0 : index
    %11 = vector.load %arg9[%c0_16, %c0_17] : memref<32x1xf32, #tpu.memory_space<vmem>>, vector<32x1xf32>
    %c0_18 = arith.constant 0 : index
    %c0_19 = arith.constant 0 : index
    %12 = vector.load %arg10[%c0_18, %c0_19] : memref<32x1xf32, #tpu.memory_space<vmem>>, vector<32x1xf32>
    %13 = vector.extract_strided_slice %4 {offsets = [0, 0], sizes = [32, 128], strides = [1, 1]} : vector<64x128xf32> to vector<32x128xf32>
    %cst_20 = arith.constant dense<0.000000e+00> : vector<32x128xf32>
    %14 = tpu.matmul %6, %13, %cst_20 {dimension_numbers = #tpu.dot_dimension_numbers<[1], [0], [0], [1], [0, 0, 1, 1], [], []>} : vector<32x32xf32>, vector<32x128xf32>, vector<32x128xf32> -> vector<32x128xf32>
    %cst_21 = arith.constant 0.000000e+00 : f32
    %15 = vector.broadcast %cst_21 : f32 to vector<8x128xf32>
    %16 = vector.extract_strided_slice %14 {offsets = [0, 0], sizes = [8, 128], strides = [1, 1]} : vector<32x128xf32> to vector<8x128xf32>
    %17 = vector.extract_strided_slice %7 {offsets = [0, 0], sizes = [1, 128], strides = [1, 1]} : vector<4x128xf32> to vector<1x128xf32>
    %18 = vector.broadcast %17 : vector<1x128xf32> to vector<8x128xf32>
    %19 = arith.mulf %16, %18 : vector<8x128xf32>
    %20 = arith.addf %15, %19 : vector<8x128xf32>
    %21 = vector.extract_strided_slice %14 {offsets = [8, 0], sizes = [8, 128], strides = [1, 1]} : vector<32x128xf32> to vector<8x128xf32>
    %22 = vector.extract_strided_slice %7 {offsets = [1, 0], sizes = [1, 128], strides = [1, 1]} : vector<4x128xf32> to vector<1x128xf32>
    %23 = vector.broadcast %22 : vector<1x128xf32> to vector<8x128xf32>
    %24 = arith.mulf %21, %23 : vector<8x128xf32>
    %25 = arith.addf %20, %24 : vector<8x128xf32>
    %26 = vector.extract_strided_slice %14 {offsets = [16, 0], sizes = [8, 128], strides = [1, 1]} : vector<32x128xf32> to vector<8x128xf32>
    %27 = vector.extract_strided_slice %7 {offsets = [2, 0], sizes = [1, 128], strides = [1, 1]} : vector<4x128xf32> to vector<1x128xf32>
    %28 = vector.broadcast %27 : vector<1x128xf32> to vector<8x128xf32>
    %29 = arith.mulf %26, %28 : vector<8x128xf32>
    %30 = arith.addf %25, %29 : vector<8x128xf32>
    %31 = vector.extract_strided_slice %14 {offsets = [24, 0], sizes = [8, 128], strides = [1, 1]} : vector<32x128xf32> to vector<8x128xf32>
    %32 = vector.extract_strided_slice %7 {offsets = [3, 0], sizes = [1, 128], strides = [1, 1]} : vector<4x128xf32> to vector<1x128xf32>
    %33 = vector.broadcast %32 : vector<1x128xf32> to vector<8x128xf32>
    %34 = arith.mulf %31, %33 : vector<8x128xf32>
    %35 = arith.addf %30, %34 : vector<8x128xf32>
    %36 = arith.truncf %35 : vector<8x128xf32> to vector<8x128xbf16>
    %cst_22 = arith.constant dense<0.000000e+00> : vector<8x256xf32>
    %37 = tpu.matmul %36, %5, %cst_22 {dimension_numbers = #tpu.dot_dimension_numbers<[1], [0], [0], [1], [0, 0, 1, 1], [], []>} : vector<8x128xbf16>, vector<128x256xbf16>, vector<8x256xf32> -> vector<8x256xf32>
    %38 = vector.broadcast %8 : vector<8x1xf32> to vector<8x256xf32>
    %39 = arith.mulf %37, %38 : vector<8x256xf32>
    %40 = vector.broadcast %9 : vector<8x1xf32> to vector<8x256xf32>
    %41 = arith.addf %39, %40 : vector<8x256xf32>
    %cst_23 = arith.constant 0.000000e+00 : f32
    %42 = vector.broadcast %cst_23 : f32 to vector<8x256xf32>
    %43 = arith.maximumf %41, %42 : vector<8x256xf32>
    %cst_24 = arith.constant dense<0.000000e+00> : vector<32x256xf32>
    %44 = tpu.matmul %10, %43, %cst_24 {dimension_numbers = #tpu.dot_dimension_numbers<[1], [0], [0], [1], [0, 0, 1, 1], [], []>} : vector<32x8xf32>, vector<8x256xf32>, vector<32x256xf32> -> vector<32x256xf32>
    %45 = vector.broadcast %11 : vector<32x1xf32> to vector<32x256xf32>
    %46 = arith.mulf %44, %45 : vector<32x256xf32>
    %47 = vector.broadcast %12 : vector<32x1xf32> to vector<32x256xf32>
    %48 = arith.addf %46, %47 : vector<32x256xf32>
    %49 = arith.negf %48 : vector<32x256xf32>
    %50 = math.exp %49 : vector<32x256xf32>
    %cst_25 = arith.constant 1.000000e+00 : f32
    %51 = vector.broadcast %cst_25 : f32 to vector<32x256xf32>
    %52 = arith.addf %51, %50 : vector<32x256xf32>
    %53 = arith.divf %51, %52 : vector<32x256xf32>
    %54 = vector.extract_strided_slice %0 {offsets = [0, 0, 0], sizes = [1, 32, 256], strides = [1, 1, 1]} : vector<2x32x256xf32> to vector<1x32x256xf32>
    %55 = vector.shape_cast %54 : vector<1x32x256xf32> to vector<32x256xf32>
    %56 = arith.mulf %55, %53 : vector<32x256xf32>
    %c0_26 = arith.constant 0 : index
    %c0_27 = arith.constant 0 : index
    %c0_28 = arith.constant 0 : index
    %57 = vector.load %arg11[%c0_26, %c0_27, %c0_28] : memref<2x32x256xf32, #tpu.memory_space<vmem>>, vector<1x32x256xf32>
    %58 = vector.shape_cast %57 : vector<1x32x256xf32> to vector<32x256xf32>
    %59 = vector.shape_cast %56 : vector<32x256xf32> to vector<1x32x256xf32>
    tpu.vector_store %arg11[%c0_26, %c0_27, %c0_28], %59 {strides = array<i32>} : memref<2x32x256xf32, #tpu.memory_space<vmem>>, vector<1x32x256xf32>,
    %60 = vector.extract_strided_slice %4 {offsets = [32, 0], sizes = [32, 128], strides = [1, 1]} : vector<64x128xf32> to vector<32x128xf32>
    %cst_29 = arith.constant dense<0.000000e+00> : vector<32x128xf32>
    %61 = tpu.matmul %6, %60, %cst_29 {dimension_numbers = #tpu.dot_dimension_numbers<[1], [0], [0], [1], [0, 0, 1, 1], [], []>} : vector<32x32xf32>, vector<32x128xf32>, vector<32x128xf32> -> vector<32x128xf32>
    %cst_30 = arith.constant 0.000000e+00 : f32
    %62 = vector.broadcast %cst_30 : f32 to vector<8x128xf32>
    %63 = vector.extract_strided_slice %61 {offsets = [0, 0], sizes = [8, 128], strides = [1, 1]} : vector<32x128xf32> to vector<8x128xf32>
    %64 = vector.extract_strided_slice %7 {offsets = [0, 0], sizes = [1, 128], strides = [1, 1]} : vector<4x128xf32> to vector<1x128xf32>
    %65 = vector.broadcast %64 : vector<1x128xf32> to vector<8x128xf32>
    %66 = arith.mulf %63, %65 : vector<8x128xf32>
    %67 = arith.addf %62, %66 : vector<8x128xf32>
    %68 = vector.extract_strided_slice %61 {offsets = [8, 0], sizes = [8, 128], strides = [1, 1]} : vector<32x128xf32> to vector<8x128xf32>
    %69 = vector.extract_strided_slice %7 {offsets = [1, 0], sizes = [1, 128], strides = [1, 1]} : vector<4x128xf32> to vector<1x128xf32>
    %70 = vector.broadcast %69 : vector<1x128xf32> to vector<8x128xf32>
    %71 = arith.mulf %68, %70 : vector<8x128xf32>
    %72 = arith.addf %67, %71 : vector<8x128xf32>
    %73 = vector.extract_strided_slice %61 {offsets = [16, 0], sizes = [8, 128], strides = [1, 1]} : vector<32x128xf32> to vector<8x128xf32>
    %74 = vector.extract_strided_slice %7 {offsets = [2, 0], sizes = [1, 128], strides = [1, 1]} : vector<4x128xf32> to vector<1x128xf32>
    %75 = vector.broadcast %74 : vector<1x128xf32> to vector<8x128xf32>
    %76 = arith.mulf %73, %75 : vector<8x128xf32>
    %77 = arith.addf %72, %76 : vector<8x128xf32>
    %78 = vector.extract_strided_slice %61 {offsets = [24, 0], sizes = [8, 128], strides = [1, 1]} : vector<32x128xf32> to vector<8x128xf32>
    %79 = vector.extract_strided_slice %7 {offsets = [3, 0], sizes = [1, 128], strides = [1, 1]} : vector<4x128xf32> to vector<1x128xf32>
    %80 = vector.broadcast %79 : vector<1x128xf32> to vector<8x128xf32>
    %81 = arith.mulf %78, %80 : vector<8x128xf32>
    %82 = arith.addf %77, %81 : vector<8x128xf32>
    %83 = arith.truncf %82 : vector<8x128xf32> to vector<8x128xbf16>
    %cst_31 = arith.constant dense<0.000000e+00> : vector<8x256xf32>
    %84 = tpu.matmul %83, %5, %cst_31 {dimension_numbers = #tpu.dot_dimension_numbers<[1], [0], [0], [1], [0, 0, 1, 1], [], []>} : vector<8x128xbf16>, vector<128x256xbf16>, vector<8x256xf32> -> vector<8x256xf32>
    %85 = vector.broadcast %8 : vector<8x1xf32> to vector<8x256xf32>
    %86 = arith.mulf %84, %85 : vector<8x256xf32>
    %87 = vector.broadcast %9 : vector<8x1xf32> to vector<8x256xf32>
    %88 = arith.addf %86, %87 : vector<8x256xf32>
    %cst_32 = arith.constant 0.000000e+00 : f32
    %89 = vector.broadcast %cst_32 : f32 to vector<8x256xf32>
    %90 = arith.maximumf %88, %89 : vector<8x256xf32>
    %cst_33 = arith.constant dense<0.000000e+00> : vector<32x256xf32>
    %91 = tpu.matmul %10, %90, %cst_33 {dimension_numbers = #tpu.dot_dimension_numbers<[1], [0], [0], [1], [0, 0, 1, 1], [], []>} : vector<32x8xf32>, vector<8x256xf32>, vector<32x256xf32> -> vector<32x256xf32>
    %92 = vector.broadcast %11 : vector<32x1xf32> to vector<32x256xf32>
    %93 = arith.mulf %91, %92 : vector<32x256xf32>
    %94 = vector.broadcast %12 : vector<32x1xf32> to vector<32x256xf32>
    %95 = arith.addf %93, %94 : vector<32x256xf32>
    %96 = arith.negf %95 : vector<32x256xf32>
    %97 = math.exp %96 : vector<32x256xf32>
    %cst_34 = arith.constant 1.000000e+00 : f32
    %98 = vector.broadcast %cst_34 : f32 to vector<32x256xf32>
    %99 = arith.addf %98, %97 : vector<32x256xf32>
    %100 = arith.divf %98, %99 : vector<32x256xf32>
    %101 = vector.extract_strided_slice %0 {offsets = [1, 0, 0], sizes = [1, 32, 256], strides = [1, 1, 1]} : vector<2x32x256xf32> to vector<1x32x256xf32>
    %102 = vector.shape_cast %101 : vector<1x32x256xf32> to vector<32x256xf32>
    %103 = arith.mulf %102, %100 : vector<32x256xf32>
    %c1 = arith.constant 1 : index
    %c0_35 = arith.constant 0 : index
    %c0_36 = arith.constant 0 : index
    %104 = vector.load %arg11[%c1, %c0_35, %c0_36] : memref<2x32x256xf32, #tpu.memory_space<vmem>>, vector<1x32x256xf32>
    %105 = vector.shape_cast %104 : vector<1x32x256xf32> to vector<32x256xf32>
    %106 = vector.shape_cast %103 : vector<32x256xf32> to vector<1x32x256xf32>
    tpu.vector_store %arg11[%c1, %c0_35, %c0_36], %106 {strides = array<i32>} : memref<2x32x256xf32, #tpu.memory_space<vmem>>, vector<1x32x256xf32>,
    return
  }
  func.func @transform_0(%arg0: i32) -> (i32, i32, i32) {
    %c0_i32 = arith.constant 0 : i32
    %c0_i32_0 = arith.constant 0 : i32
    %c0_i32_1 = arith.constant 0 : i32
    return %arg0, %c0_i32, %c0_i32_0 : i32, i32, i32
  }
  func.func @transform_1(%arg0: i32) -> (i32, i32) {
    %c0_i32 = arith.constant 0 : i32
    %c0_i32_0 = arith.constant 0 : i32
    %c0_i32_1 = arith.constant 0 : i32
    return %c0_i32, %c0_i32_0 : i32, i32
  }
  func.func @transform_2(%arg0: i32) -> (i32, i32) {
    %c0_i32 = arith.constant 0 : i32
    %c0_i32_0 = arith.constant 0 : i32
    %c0_i32_1 = arith.constant 0 : i32
    return %c0_i32, %c0_i32_0 : i32, i32
  }
  func.func @transform_3(%arg0: i32) -> (i32, i32) {
    %c0_i32 = arith.constant 0 : i32
    %c0_i32_0 = arith.constant 0 : i32
    %c0_i32_1 = arith.constant 0 : i32
    return %c0_i32, %c0_i32_0 : i32, i32
  }
  func.func @transform_4(%arg0: i32) -> (i32, i32) {
    %c0_i32 = arith.constant 0 : i32
    %c0_i32_0 = arith.constant 0 : i32
    %c0_i32_1 = arith.constant 0 : i32
    return %c0_i32, %c0_i32_0 : i32, i32
  }
  func.func @transform_5(%arg0: i32) -> (i32, i32) {
    %c0_i32 = arith.constant 0 : i32
    %c0_i32_0 = arith.constant 0 : i32
    %c0_i32_1 = arith.constant 0 : i32
    return %c0_i32, %c0_i32_0 : i32, i32
  }
  func.func @transform_6(%arg0: i32) -> (i32, i32) {
    %c0_i32 = arith.constant 0 : i32
    %c0_i32_0 = arith.constant 0 : i32
    %c0_i32_1 = arith.constant 0 : i32
    return %c0_i32, %c0_i32_0 : i32, i32
  }
  func.func @transform_7(%arg0: i32) -> (i32, i32) {
    %c0_i32 = arith.constant 0 : i32
    %c0_i32_0 = arith.constant 0 : i32
    %c0_i32_1 = arith.constant 0 : i32
    return %c0_i32, %c0_i32_0 : i32, i32
  }
  func.func @transform_8(%arg0: i32) -> (i32, i32) {
    %c0_i32 = arith.constant 0 : i32
    %c0_i32_0 = arith.constant 0 : i32
    %c0_i32_1 = arith.constant 0 : i32
    return %c0_i32, %c0_i32_0 : i32, i32
  }
  func.func @transform_9(%arg0: i32) -> (i32, i32) {
    %c0_i32 = arith.constant 0 : i32
    %c0_i32_0 = arith.constant 0 : i32
    %c0_i32_1 = arith.constant 0 : i32
    return %c0_i32, %c0_i32_0 : i32, i32
  }
  func.func @transform_10(%arg0: i32) -> (i32, i32, i32) {
    %c0_i32 = arith.constant 0 : i32
    %c0_i32_0 = arith.constant 0 : i32
    %c0_i32_1 = arith.constant 0 : i32
    return %arg0, %c0_i32, %c0_i32_0 : i32, i32, i32
  }
}

</mosaic_0001>

<llo_original>
// kernel: tpu_custom_call.1
$region0: #{tpu_custom_call.1}
  #allocation0 [shape = 'u32[]', space=smem, size = 0x4, offset = 0x4, fixed_abs, tag = 'smem constant byte address 0x4 - core index']
  #allocation1 [shape = 'u32[72,128]{1,0:T(1,128)}', space=vmem, size = 0x9000, scoped, tag = 'internal scratch']
  %s0 = inlined_call_operand.hbm [shape: f32[2,32,256], index: 0, kind: input, shape index: {}]
  %s1 = inlined_call_operand.hbm [shape: bf16[256,128], index: 1, kind: input, shape index: {}]
  %s2 = inlined_call_operand.hbm [shape: bf16[128,256], index: 2, kind: input, shape index: {}]
  %s3 = inlined_call_operand.vmem [shape: f32[32,32], index: 3, kind: input, shape index: {}]
  %s4 = inlined_call_operand.vmem [shape: f32[4,128], index: 4, kind: input, shape index: {}]
  %s5 = inlined_call_operand.vmem [shape: f32[8,1], index: 5, kind: input, shape index: {}]
  %s6 = inlined_call_operand.vmem [shape: f32[8,1], index: 6, kind: input, shape index: {}]
  %s7 = inlined_call_operand.vmem [shape: f32[32,8], index: 7, kind: input, shape index: {}]
  %s8 = inlined_call_operand.vmem [shape: f32[32,1], index: 8, kind: input, shape index: {}]
  %s9 = inlined_call_operand.vmem [shape: f32[32,1], index: 9, kind: input, shape index: {}]
  %s10 = inlined_call_operand.hbm [shape: f32[2,32,256], index: 10, kind: output, shape index: {}]
  %s11 = sld [smem:[#allocation0]]
  $region62: #{tpu_custom_call.1} parent=0
    _
  %s13 = ssub.s32 1, %s11
  %s14 = scalar_select 0, %s13, %s11
  $region1: #{tpu_custom_call.1} parent=0
    #allocation2 [shape = 'u8[65536]{0}', space=vmem, size = 0x10000, scoped, tag = 'input window, operand 0, single buffered']
    #allocation3 [shape = 's32[1]{0}', space=sflag, size = 0x4, scoped, tag = 'scoped memory for tpu_custom_call.1']
    #allocation4 [shape = 's32[1]{0}', space=sflag, size = 0x4, scoped, tag = 'scoped memory for tpu_custom_call.1']
    #allocation5 [shape = 'u8[65536]{0}', space=vmem, size = 0x10000, scoped, tag = 'input window, operand 1, single buffered']
    #allocation6 [shape = 's32[1]{0}', space=sflag, size = 0x4, scoped, tag = 'scoped memory for tpu_custom_call.1']
    #allocation7 [shape = 'u8[65536]{0}', space=vmem, size = 0x10000, scoped, tag = 'input window, operand 2, single buffered']
    #allocation8 [shape = 'u8[65536]{0}', space=vmem, size = 0x10000, scoped, tag = 'output window, operand 0, single buffered']
    %15 = vsyncpa [#allocation3], 0
    %16 = vsyncpa [#allocation6], 0
    %17 = vsyncpa [#allocation4], 0
    // Predicated region
    $region2: #{tpu_custom_call.1} parent=1 // pred_check
      _
    $region3: #{tpu_custom_call.1} parent=1 // pred_check_branch
      %19 = sbr.rel (0) target = $region5
    $region4: #{tpu_custom_call.1} parent=1 // pred_region
      %21 = vsyncadd [#allocation3], 0
      %s22 = sshll.u32 %s0, 4
      %s23 = int_to_ptr.hbm [resolvable:$true] %s22
      %s24 = sshll.u32 [#allocation2], 4
      %s25 = int_to_ptr.vmem [resolvable:$true] %s24
      %30 = dma.hbm_to_vmem [thread:$0]  %s23, 2048, %s25, [#allocation3], 256, 256, 16
    $region5: #{tpu_custom_call.1} parent=1 // pred_fallthru
      _
    // Predicated region
    $region6: #{tpu_custom_call.1} parent=1 // pred_check
      _
    $region7: #{tpu_custom_call.1} parent=1 // pred_check_branch
      %32 = sbr.rel (0) target = $region9
    $region8: #{tpu_custom_call.1} parent=1 // pred_region
      %34 = vsyncadd [#allocation6], 0
      %s35 = sshll.u32 %s1, 4
      %s36 = int_to_ptr.hbm [resolvable:$true] %s35
      %s37 = sshll.u32 [#allocation5], 4
      %s38 = int_to_ptr.vmem [resolvable:$true] %s37
      %43 = dma.hbm_to_vmem [thread:$0]  %s36, 2048, %s38, [#allocation6], 64, 64, 4
    $region9: #{tpu_custom_call.1} parent=1 // pred_fallthru
      _
    // Predicated region
    $region10: #{tpu_custom_call.1} parent=1 // pred_check
      _
    $region11: #{tpu_custom_call.1} parent=1 // pred_check_branch
      %45 = sbr.rel (0) target = $region13
    $region12: #{tpu_custom_call.1} parent=1 // pred_region
      %47 = vsyncadd [#allocation6], 0
      %s48 = sshll.u32 %s2, 4
      %s49 = int_to_ptr.hbm [resolvable:$true] %s48
      %s50 = sshll.u32 [#allocation7], 4
      %s51 = int_to_ptr.vmem [resolvable:$true] %s50
      %56 = dma.hbm_to_vmem [thread:$0]  %s49, 2048, %s51, [#allocation6], 128, 128, 8
    $region13: #{tpu_custom_call.1} parent=1 // pred_fallthru
      _
    // Predicated region
    $region14: #{tpu_custom_call.1} parent=1 // pred_check
      _
    $region15: #{tpu_custom_call.1} parent=1 // pred_check_branch
      %58 = sbr.rel (0) target = $region17
    $region16: #{tpu_custom_call.1} parent=1 // pred_region
      _
    $region17: #{tpu_custom_call.1} parent=1 // pred_fallthru
      _
    // Predicated region
    $region18: #{tpu_custom_call.1} parent=1 // pred_check
      _
    $region19: #{tpu_custom_call.1} parent=1 // pred_check_branch
      %60 = sbr.rel (0) target = $region21
    $region20: #{tpu_custom_call.1} parent=1 // pred_region
      _
    $region21: #{tpu_custom_call.1} parent=1 // pred_fallthru
      _
    // Predicated region
    $region22: #{tpu_custom_call.1} parent=1 // pred_check
      _
    $region23: #{tpu_custom_call.1} parent=1 // pred_check_branch
      %62 = sbr.rel (0) target = $region25
    $region24: #{tpu_custom_call.1} parent=1 // pred_region
      _
    $region25: #{tpu_custom_call.1} parent=1 // pred_fallthru
      _
    // Predicated region
    $region26: #{tpu_custom_call.1} parent=1 // pred_check
      _
    $region27: #{tpu_custom_call.1} parent=1 // pred_check_branch
      %64 = sbr.rel (0) target = $region29
    $region28: #{tpu_custom_call.1} parent=1 // pred_region
      _
    $region29: #{tpu_custom_call.1} parent=1 // pred_fallthru
      _
    // Predicated region
    $region30: #{tpu_custom_call.1} parent=1 // pred_check
      _
    $region31: #{tpu_custom_call.1} parent=1 // pred_check_branch
      %66 = sbr.rel (0) target = $region33
    $region32: #{tpu_custom_call.1} parent=1 // pred_region
      _
    $region33: #{tpu_custom_call.1} parent=1 // pred_fallthru
      _
    // Predicated region
    $region34: #{tpu_custom_call.1} parent=1 // pred_check
      _
    $region35: #{tpu_custom_call.1} parent=1 // pred_check_branch
      %68 = sbr.rel (0) target = $region37
    $region36: #{tpu_custom_call.1} parent=1 // pred_region
      _
    $region37: #{tpu_custom_call.1} parent=1 // pred_fallthru
      _
    // Predicated region
    $region38: #{tpu_custom_call.1} parent=1 // pred_check
      _
    $region39: #{tpu_custom_call.1} parent=1 // pred_check_branch
      %70 = sbr.rel (0) target = $region41
    $region40: #{tpu_custom_call.1} parent=1 // pred_region
      _
    $region41: #{tpu_custom_call.1} parent=1 // pred_fallthru
      _
    // Predicated region
    $region42: #{tpu_custom_call.1} parent=1 // pred_check
      _
    $region43: #{tpu_custom_call.1} parent=1 // pred_check_branch
      %72 = sbr.rel (0) target = $region45
    $region44: #{tpu_custom_call.1} parent=1 // pred_region
      %74 = dma.done [#allocation3], 2048
    $region45: #{tpu_custom_call.1} parent=1 // pred_fallthru
      _
    // Predicated region
    $region46: #{tpu_custom_call.1} parent=1 // pred_check
      _
    $region47: #{tpu_custom_call.1} parent=1 // pred_check_branch
      %76 = sbr.rel (0) target = $region49
    $region48: #{tpu_custom_call.1} parent=1 // pred_region
      %78 = dma.done [#allocation6], 2048
    $region49: #{tpu_custom_call.1} parent=1 // pred_fallthru
      _
    // Predicated region
    $region50: #{tpu_custom_call.1} parent=1 // pred_check
      _
    $region51: #{tpu_custom_call.1} parent=1 // pred_check_branch
      %80 = sbr.rel (0) target = $region53
    $region52: #{tpu_custom_call.1} parent=1 // pred_region
      %82 = dma.done [#allocation6], 2048
    $region53: #{tpu_custom_call.1} parent=1 // pred_fallthru
      _
    %v83 = vld [vmem:[#allocation2] sm:$0xff]
    %v84 = vld [vmem:[#allocation2 + $0x8] sm:$0xff]
    %v85 = vld [vmem:[#allocation2 + $0x10] sm:$0xff]
    %v86 = vld [vmem:[#allocation2 + $0x18] sm:$0xff]
    %v87 = vld [vmem:[#allocation2 + $0x20] sm:$0xff]
    %v88 = vld [vmem:[#allocation2 + $0x28] sm:$0xff]
    %v89 = vld [vmem:[#allocation2 + $0x30] sm:$0xff]
    %v90 = vld [vmem:[#allocation2 + $0x38] sm:$0xff]
    %v91 = vld [vmem:[#allocation2 + $0x40] sm:$0xff]
    %v92 = vld [vmem:[#allocation2 + $0x48] sm:$0xff]
    %v93 = vld [vmem:[#allocation2 + $0x50] sm:$0xff]
    %v94 = vld [vmem:[#allocation2 + $0x58] sm:$0xff]
    %v95 = vld [vmem:[#allocation2 + $0x60] sm:$0xff]
    %v96 = vld [vmem:[#allocation2 + $0x68] sm:$0xff]
    %v97 = vld [vmem:[#allocation2 + $0x70] sm:$0xff]
    %v98 = vld [vmem:[#allocation2 + $0x78] sm:$0xff]
    %v99 = vpack.c.bf16 %v85, %v83
    %v100 = vpack.c.bf16 %v86, %v84
    %v101 = vpack.c.bf16 %v89, %v87
    %v102 = vpack.c.bf16 %v90, %v88
    %v103 = vpack.c.bf16 %v93, %v91
    %v104 = vpack.c.bf16 %v94, %v92
    %v105 = vpack.c.bf16 %v97, %v95
    %v106 = vpack.c.bf16 %v98, %v96
    %v107 = vld [vmem:[#allocation5] sm:$0xf]
    %v108 = vld [vmem:[#allocation5 + $0x4] sm:$0xf]
    %v109 = vld [vmem:[#allocation5 + $0x8] sm:$0xf]
    %v110 = vld [vmem:[#allocation5 + $0xc] sm:$0xf]
    %v111 = vld [vmem:[#allocation5 + $0x10] sm:$0xf]
    %v112 = vld [vmem:[#allocation5 + $0x14] sm:$0xf]
    %v113 = vld [vmem:[#allocation5 + $0x18] sm:$0xf]
    %v114 = vld [vmem:[#allocation5 + $0x1c] sm:$0xf]
    %v115 = vld [vmem:[#allocation5 + $0x20] sm:$0xf]
    %v116 = vld [vmem:[#allocation5 + $0x24] sm:$0xf]
    %v117 = vld [vmem:[#allocation5 + $0x28] sm:$0xf]
    %v118 = vld [vmem:[#allocation5 + $0x2c] sm:$0xf]
    %v119 = vld [vmem:[#allocation5 + $0x30] sm:$0xf]
    %v120 = vld [vmem:[#allocation5 + $0x34] sm:$0xf]
    %v121 = vld [vmem:[#allocation5 + $0x38] sm:$0xf]
    %v122 = vld [vmem:[#allocation5 + $0x3c] sm:$0xf]
    %v123 = vld [vmem:[#allocation5 + $0x40] sm:$0xf]
    %v124 = vld [vmem:[#allocation5 + $0x44] sm:$0xf]
    %v125 = vld [vmem:[#allocation5 + $0x48] sm:$0xf]
    %v126 = vld [vmem:[#allocation5 + $0x4c] sm:$0xf]
    %v127 = vld [vmem:[#allocation5 + $0x50] sm:$0xf]
    %v128 = vld [vmem:[#allocation5 + $0x54] sm:$0xf]
    %v129 = vld [vmem:[#allocation5 + $0x58] sm:$0xf]
    %v130 = vld [vmem:[#allocation5 + $0x5c] sm:$0xf]
    %v131 = vld [vmem:[#allocation5 + $0x60] sm:$0xf]
    %v132 = vld [vmem:[#allocation5 + $0x64] sm:$0xf]
    %v133 = vld [vmem:[#allocation5 + $0x68] sm:$0xf]
    %v134 = vld [vmem:[#allocation5 + $0x6c] sm:$0xf]
    %v135 = vld [vmem:[#allocation5 + $0x70] sm:$0xf]
    %v136 = vld [vmem:[#allocation5 + $0x74] sm:$0xf]
    %v137 = vld [vmem:[#allocation5 + $0x78] sm:$0xf]
    %v138 = vld [vmem:[#allocation5 + $0x7c] sm:$0xf]
    %v171 = vunpack.c.l.b16 %v107
    %v172 = vunpack.c.l.b16 %v108
    %v173 = vunpack.c.l.b16 %v109
    %v174 = vunpack.c.l.b16 %v110
    %v175 = vunpack.c.l.b16 %v111
    %v176 = vunpack.c.l.b16 %v112
    %v177 = vunpack.c.l.b16 %v113
    %v178 = vunpack.c.l.b16 %v114
    %v179 = vunpack.c.l.b16 %v115
    %v180 = vunpack.c.l.b16 %v116
    %v181 = vunpack.c.l.b16 %v117
    %v182 = vunpack.c.l.b16 %v118
    %v183 = vunpack.c.l.b16 %v119
    %v184 = vunpack.c.l.b16 %v120
    %v185 = vunpack.c.l.b16 %v121
    %v186 = vunpack.c.l.b16 %v122
    %v187 = vunpack.c.l.b16 %v123
    %v188 = vunpack.c.l.b16 %v124
    %v189 = vunpack.c.l.b16 %v125
    %v190 = vunpack.c.l.b16 %v126
    %v191 = vunpack.c.l.b16 %v127
    %v192 = vunpack.c.l.b16 %v128
    %v193 = vunpack.c.l.b16 %v129
    %v194 = vunpack.c.l.b16 %v130
    %v195 = vunpack.c.l.b16 %v131
    %v196 = vunpack.c.l.b16 %v132
    %v197 = vunpack.c.l.b16 %v133
    %v198 = vunpack.c.l.b16 %v134
    %v199 = vunpack.c.l.b16 %v135
    %v200 = vunpack.c.l.b16 %v136
    %v201 = vunpack.c.l.b16 %v137
    %v202 = vunpack.c.l.b16 %v138
    %v203 = vpack.c.b16 %v172, %v171
    %v204 = vpack.c.b16 %v174, %v173
    %v205 = vpack.c.b16 %v176, %v175
    %v206 = vpack.c.b16 %v178, %v177
    %v207 = vpack.c.b16 %v180, %v179
    %v208 = vpack.c.b16 %v182, %v181
    %v209 = vpack.c.b16 %v184, %v183
    %v210 = vpack.c.b16 %v186, %v185
    %v211 = vpack.c.b16 %v188, %v187
    %v212 = vpack.c.b16 %v190, %v189
    %v213 = vpack.c.b16 %v192, %v191
    %v214 = vpack.c.b16 %v194, %v193
    %v215 = vpack.c.b16 %v196, %v195
    %v216 = vpack.c.b16 %v198, %v197
    %v217 = vpack.c.b16 %v200, %v199
    %v218 = vpack.c.b16 %v202, %v201
    %235 = vmatpush.bf16.msra.mxu0 %v210
    %236 = vmatpush.bf16.msra.mxu0 %v209
    %237 = vmatpush.bf16.msra.mxu0 %v208
    %238 = vmatpush.bf16.msra.mxu0 %v207
    %239 = vmatpush.bf16.msra.mxu0 %v206
    %240 = vmatpush.bf16.msra.mxu0 %v205
    %241 = vmatpush.bf16.msra.mxu0 %v204
    %242 = vmatpush.bf16.msra.mxu0 %v203
    %243 = vmatmul.bf16.gmra.mxu0 %v99
    %v244 = vpop.f32.mrf.mxu0
    %v245 = vadd.f32 0.0, %v244
    %v246 = vpop.f32.mrf.mxu0
    %v247 = vadd.f32 0.0, %v246
    %248 = vmatmul.bf16.gmra.mxu0 %v101
    %v249 = vpop.f32.mrf.mxu0
    %v250 = vadd.f32 0.0, %v249
    %v251 = vpop.f32.mrf.mxu0
    %v252 = vadd.f32 0.0, %v251
    %253 = vmatmul.bf16.gmra.mxu0 %v103
    %v254 = vpop.f32.mrf.mxu0
    %v255 = vadd.f32 0.0, %v254
    %v256 = vpop.f32.mrf.mxu0
    %v257 = vadd.f32 0.0, %v256
    %258 = vmatmul.bf16.gmra.mxu0 %v105
    %v259 = vpop.f32.mrf.mxu0
    %v260 = vadd.f32 0.0, %v259
    %v261 = vpop.f32.mrf.mxu0
    %v262 = vadd.f32 0.0, %v261
    %263 = vdwg.mxu0
    %264 = vmatpush.bf16.msra.mxu0 %v218
    %265 = vmatpush.bf16.msra.mxu0 %v217
    %266 = vmatpush.bf16.msra.mxu0 %v216
    %267 = vmatpush.bf16.msra.mxu0 %v215
    %268 = vmatpush.bf16.msra.mxu0 %v214
    %269 = vmatpush.bf16.msra.mxu0 %v213
    %270 = vmatpush.bf16.msra.mxu0 %v212
    %271 = vmatpush.bf16.msra.mxu0 %v211
    %272 = vmatmul.bf16.gmra.mxu0 %v100
    %v273 = vpop.f32.mrf.mxu0
    %v274 = vadd.f32 %v245, %v273
    %v275 = vpop.f32.mrf.mxu0
    %v276 = vadd.f32 %v247, %v275
    %277 = vmatmul.bf16.gmra.mxu0 %v102
    %v278 = vpop.f32.mrf.mxu0
    %v279 = vadd.f32 %v250, %v278
    %v280 = vpop.f32.mrf.mxu0
    %v281 = vadd.f32 %v252, %v280
    %282 = vmatmul.bf16.gmra.mxu0 %v104
    %v283 = vpop.f32.mrf.mxu0
    %v284 = vadd.f32 %v255, %v283
    %v285 = vpop.f32.mrf.mxu0
    %v286 = vadd.f32 %v257, %v285
    %287 = vmatmul.bf16.gmra.mxu0 %v106
    %v288 = vpop.f32.mrf.mxu0
    %v289 = vadd.f32 %v260, %v288
    %v290 = vpop.f32.mrf.mxu0
    %v291 = vadd.f32 %v262, %v290
    %292 = vdwg.mxu0
    %v293 = vld [vmem:[#allocation7] sm:$0xff]
    %v294 = vld [vmem:[#allocation7 + $0x8] sm:$0xff]
    %v295 = vld [vmem:[#allocation7 + $0x10] sm:$0xff]
    %v296 = vld [vmem:[#allocation7 + $0x18] sm:$0xff]
    %v297 = vld [vmem:[#allocation7 + $0x20] sm:$0xff]
    %v298 = vld [vmem:[#allocation7 + $0x28] sm:$0xff]
    %v299 = vld [vmem:[#allocation7 + $0x30] sm:$0xff]
    %v300 = vld [vmem:[#allocation7 + $0x38] sm:$0xff]
    %v301 = vld [vmem:[#allocation7 + $0x40] sm:$0xff]
    %v302 = vld [vmem:[#allocation7 + $0x48] sm:$0xff]
    %v303 = vld [vmem:[#allocation7 + $0x50] sm:$0xff]
    %v304 = vld [vmem:[#allocation7 + $0x58] sm:$0xff]
    %v305 = vld [vmem:[#allocation7 + $0x60] sm:$0xff]
    %v306 = vld [vmem:[#allocation7 + $0x68] sm:$0xff]
    %v307 = vld [vmem:[#allocation7 + $0x70] sm:$0xff]
    %v308 = vld [vmem:[#allocation7 + $0x78] sm:$0xff]
    %v309 = vld [vmem:[%s3] sm:$0xff]
    %v310 = vld [vmem:[%s3 + $0x8] sm:$0xff]
    %v311 = vld [vmem:[%s3 + $0x10] sm:$0xff]
    %v312 = vld [vmem:[%s3 + $0x18] sm:$0xff]
    %v313 = vld [vmem:[%s4] sm:$0xf]
    %v314 = vld [vmem:[%s5] sm:$0xff]
    %v315 = vld [vmem:[%s6] sm:$0xff]
    %v316 = vld [vmem:[%s7] sm:$0xff]
    %v317 = vld [vmem:[%s7 + $0x8] sm:$0xff]
    %v318 = vld [vmem:[%s7 + $0x10] sm:$0xff]
    %v319 = vld [vmem:[%s7 + $0x18] sm:$0xff]
    %v320 = vld [vmem:[%s8] sm:$0xff]
    %v321 = vld [vmem:[%s8 + $0x8] sm:$0xff]
    %v322 = vld [vmem:[%s8 + $0x10] sm:$0xff]
    %v323 = vld [vmem:[%s8 + $0x18] sm:$0xff]
    %v324 = vld [vmem:[%s9] sm:$0xff]
    %v325 = vld [vmem:[%s9 + $0x8] sm:$0xff]
    %v326 = vld [vmem:[%s9 + $0x10] sm:$0xff]
    %v327 = vld [vmem:[%s9 + $0x18] sm:$0xff]
    %vm328 = vcmask 261120
    %v330 = vsel %vm328, %v309, 0
    %v333 = vsel %vm328, %v310, 0
    %v336 = vsel %vm328, %v311, 0
    %v339 = vsel %vm328, %v312, 0
    %341 = vmatpush.msra.mxu0 0.0
    %342 = vmatpush.msra.mxu0 0.0
    %343 = vmatpush.msra.mxu0 0.0
    %344 = vmatpush.msra.mxu0 0.0
    %345 = vmatpush.msra.mxu0 0.0
    %346 = vmatpush.msra.mxu0 0.0
    %347 = vmatpush.msra.mxu0 0.0
    %348 = vmatpush.msra.mxu0 0.0
    %349 = vmatpush.msra.mxu0 0.0
    %350 = vmatpush.msra.mxu0 0.0
    %351 = vmatpush.msra.mxu0 0.0
    %352 = vmatpush.msra.mxu0 0.0
    %353 = vmatpush.msra.mxu0 %v281
    %354 = vmatpush.msra.mxu0 %v279
    %355 = vmatpush.msra.mxu0 %v276
    %356 = vmatpush.msra.mxu0 %v274
    %357 = vmatmul.f32.gmra.mxu0 %v330
    %v358 = vpop.f32.mrf.mxu0
    %v359 = vadd.f32 0.0, %v358
    %360 = vmatmul.f32.gmra.mxu0 %v333
    %v361 = vpop.f32.mrf.mxu0
    %v362 = vadd.f32 0.0, %v361
    %363 = vmatmul.f32.gmra.mxu0 %v336
    %v364 = vpop.f32.mrf.mxu0
    %v365 = vadd.f32 0.0, %v364
    %366 = vmatmul.f32.gmra.mxu0 %v339
    %v367 = vpop.f32.mrf.mxu0
    %v368 = vadd.f32 0.0, %v367
    %369 = vdwg.mxu0
    %v370 = vperm.slane %v313, 0
    %v371 = vmul.f32 %v359, %v370
    %v372 = vadd.f32 %v371, 0.0
    %v373 = vperm.slane %v313, 1
    %v374 = vmul.f32 %v362, %v373
    %v375 = vadd.f32 %v372, %v374
    %v376 = vperm.slane %v313, 2
    %v377 = vmul.f32 %v365, %v376
    %v378 = vadd.f32 %v375, %v377
    %v379 = vperm.slane %v313, 3
    %v380 = vmul.f32 %v368, %v379
    %v381 = vadd.f32 %v378, %v380
    %v382 = vpack.c.bf16 %v381, %v381
    %v399 = vunpack.c.l.b16 %v293
    %v400 = vunpack.c.h.b16 %v293
    %v401 = vunpack.c.l.b16 %v294
    %v402 = vunpack.c.h.b16 %v294
    %v403 = vunpack.c.l.b16 %v295
    %v404 = vunpack.c.h.b16 %v295
    %v405 = vunpack.c.l.b16 %v296
    %v406 = vunpack.c.h.b16 %v296
    %v407 = vunpack.c.l.b16 %v297
    %v408 = vunpack.c.h.b16 %v297
    %v409 = vunpack.c.l.b16 %v298
    %v410 = vunpack.c.h.b16 %v298
    %v411 = vunpack.c.l.b16 %v299
    %v412 = vunpack.c.h.b16 %v299
    %v413 = vunpack.c.l.b16 %v300
    %v414 = vunpack.c.h.b16 %v300
    %v415 = vunpack.c.l.b16 %v301
    %v416 = vunpack.c.h.b16 %v301
    %v417 = vunpack.c.l.b16 %v302
    %v418 = vunpack.c.h.b16 %v302
    %v419 = vunpack.c.l.b16 %v303
    %v420 = vunpack.c.h.b16 %v303
    %v421 = vunpack.c.l.b16 %v304
    %v422 = vunpack.c.h.b16 %v304
    %v423 = vunpack.c.l.b16 %v305
    %v424 = vunpack.c.h.b16 %v305
    %v425 = vunpack.c.l.b16 %v306
    %v426 = vunpack.c.h.b16 %v306
    %v427 = vunpack.c.l.b16 %v307
    %v428 = vunpack.c.h.b16 %v307
    %v429 = vunpack.c.l.b16 %v308
    %v430 = vunpack.c.h.b16 %v308
    %v431 = vpack.c.b16 %v401, %v399
    %v432 = vpack.c.b16 %v402, %v400
    %v433 = vpack.c.b16 %v405, %v403
    %v434 = vpack.c.b16 %v406, %v404
    %v435 = vpack.c.b16 %v409, %v407
    %v436 = vpack.c.b16 %v410, %v408
    %v437 = vpack.c.b16 %v413, %v411
    %v438 = vpack.c.b16 %v414, %v412
    %v439 = vpack.c.b16 %v417, %v415
    %v440 = vpack.c.b16 %v418, %v416
    %v441 = vpack.c.b16 %v421, %v419
    %v442 = vpack.c.b16 %v422, %v420
    %v443 = vpack.c.b16 %v425, %v423
    %v444 = vpack.c.b16 %v426, %v424
    %v445 = vpack.c.b16 %v429, %v427
    %v446 = vpack.c.b16 %v430, %v428
    %463 = vmatpush.bf16.msra.mxu0 %v445
    %464 = vmatpush.bf16.msra.mxu0 %v443
    %465 = vmatpush.bf16.msra.mxu0 %v441
    %466 = vmatpush.bf16.msra.mxu0 %v439
    %467 = vmatpush.bf16.msra.mxu0 %v437
    %468 = vmatpush.bf16.msra.mxu0 %v435
    %469 = vmatpush.bf16.msra.mxu0 %v433
    %470 = vmatpush.bf16.msra.mxu0 %v431
    %471 = vmatmul.bf16.gmra.mxu0 %v382
    %v472 = vpop.f32.mrf.mxu0
    %v473 = vadd.f32 0.0, %v472
    %v474 = vpop.f32.mrf.mxu0
    %475 = vdwg.mxu0
    %476 = vmatpush.bf16.msra.mxu0 %v446
    %477 = vmatpush.bf16.msra.mxu0 %v444
    %478 = vmatpush.bf16.msra.mxu0 %v442
    %479 = vmatpush.bf16.msra.mxu0 %v440
    %480 = vmatpush.bf16.msra.mxu0 %v438
    %481 = vmatpush.bf16.msra.mxu0 %v436
    %482 = vmatpush.bf16.msra.mxu0 %v434
    %483 = vmatpush.bf16.msra.mxu0 %v432
    %484 = vmatmul.bf16.gmra.mxu0 %v382
    %v485 = vpop.f32.mrf.mxu0
    %v486 = vadd.f32 0.0, %v485
    %v487 = vpop.f32.mrf.mxu0
    %488 = vdwg.mxu0
    %490 = vset.pattern.permute.xlu0 0
    %491 = vperm.xlu0 %490, %v314
    %v492 = vpop.permute.xlu0 %491
    %v494 = vmul.f32 %v473, %v492
    %v495 = vmul.f32 %v486, %v492
    %497 = vset.pattern.permute.xlu0 0
    %498 = vperm.xlu0 %497, %v315
    %v499 = vpop.permute.xlu0 %498
    %v501 = vadd.f32 %v494, %v499
    %v502 = vadd.f32 %v495, %v499
    %v503 = vmax.f32 %v501, 0.0
    %v504 = vmax.f32 %v502, 0.0
    %vm505 = vcmask 64512
    %v507 = vsel %vm505, %v316, 0
    %v510 = vsel %vm505, %v317, 0
    %v513 = vsel %vm505, %v318, 0
    %v516 = vsel %vm505, %v319, 0
    %518 = vmatpush.msra.mxu0 0.0
    %519 = vmatpush.msra.mxu0 0.0
    %520 = vmatpush.msra.mxu0 0.0
    %521 = vmatpush.msra.mxu0 0.0
    %522 = vmatpush.msra.mxu0 0.0
    %523 = vmatpush.msra.mxu0 0.0
    %524 = vmatpush.msra.mxu0 0.0
    %525 = vmatpush.msra.mxu0 0.0
    %526 = vmatpush.msra.mxu0 0.0
    %527 = vmatpush.msra.mxu0 0.0
    %528 = vmatpush.msra.mxu0 0.0
    %529 = vmatpush.msra.mxu0 0.0
    %530 = vmatpush.msra.mxu0 0.0
    %531 = vmatpush.msra.mxu0 0.0
    %532 = vmatpush.msra.mxu0 0.0
    %533 = vmatpush.msra.mxu0 %v503
    %534 = vmatmul.f32.gmra.mxu0 %v507
    %v535 = vpop.f32.mrf.mxu0
    %v536 = vadd.f32 0.0, %v535
    %537 = vmatmul.f32.gmra.mxu0 %v510
    %v538 = vpop.f32.mrf.mxu0
    %v539 = vadd.f32 0.0, %v538
    %540 = vmatmul.f32.gmra.mxu0 %v513
    %v541 = vpop.f32.mrf.mxu0
    %v542 = vadd.f32 0.0, %v541
    %543 = vmatmul.f32.gmra.mxu0 %v516
    %v544 = vpop.f32.mrf.mxu0
    %v545 = vadd.f32 0.0, %v544
    %546 = vdwg.mxu0
    %547 = vmatpush.msra.mxu0 0.0
    %548 = vmatpush.msra.mxu0 0.0
    %549 = vmatpush.msra.mxu0 0.0
    %550 = vmatpush.msra.mxu0 0.0
    %551 = vmatpush.msra.mxu0 0.0
    %552 = vmatpush.msra.mxu0 0.0
    %553 = vmatpush.msra.mxu0 0.0
    %554 = vmatpush.msra.mxu0 0.0
    %555 = vmatpush.msra.mxu0 0.0
    %556 = vmatpush.msra.mxu0 0.0
    %557 = vmatpush.msra.mxu0 0.0
    %558 = vmatpush.msra.mxu0 0.0
    %559 = vmatpush.msra.mxu0 0.0
    %560 = vmatpush.msra.mxu0 0.0
    %561 = vmatpush.msra.mxu0 0.0
    %562 = vmatpush.msra.mxu0 %v504
    %563 = vmatmul.f32.gmra.mxu0 %v507
    %v564 = vpop.f32.mrf.mxu0
    %v565 = vadd.f32 0.0, %v564
    %566 = vmatmul.f32.gmra.mxu0 %v510
    %v567 = vpop.f32.mrf.mxu0
    %v568 = vadd.f32 0.0, %v567
    %569 = vmatmul.f32.gmra.mxu0 %v513
    %v570 = vpop.f32.mrf.mxu0
    %v571 = vadd.f32 0.0, %v570
    %572 = vmatmul.f32.gmra.mxu0 %v516
    %v573 = vpop.f32.mrf.mxu0
    %v574 = vadd.f32 0.0, %v573
    %575 = vdwg.mxu0
    %577 = vset.pattern.permute.xlu0 0
    %578 = vperm.xlu0 %577, %v320
    %v579 = vpop.permute.xlu0 %578
    %582 = vset.pattern.permute.xlu0 0
    %583 = vperm.xlu0 %582, %v321
    %v584 = vpop.permute.xlu0 %583
    %587 = vset.pattern.permute.xlu0 0
    %588 = vperm.xlu0 %587, %v322
    %v589 = vpop.permute.xlu0 %588
    %592 = vset.pattern.permute.xlu0 0
    %593 = vperm.xlu0 %592, %v323
    %v594 = vpop.permute.xlu0 %593
    %v596 = vmul.f32 %v536, %v579
    %v597 = vmul.f32 %v565, %v579
    %v598 = vmul.f32 %v539, %v584
    %v599 = vmul.f32 %v568, %v584
    %v600 = vmul.f32 %v542, %v589
    %v601 = vmul.f32 %v571, %v589
    %v602 = vmul.f32 %v545, %v594
    %v603 = vmul.f32 %v574, %v594
    %605 = vset.pattern.permute.xlu0 0
    %606 = vperm.xlu0 %605, %v324
    %v607 = vpop.permute.xlu0 %606
    %610 = vset.pattern.permute.xlu0 0
    %611 = vperm.xlu0 %610, %v325
    %v612 = vpop.permute.xlu0 %611
    %615 = vset.pattern.permute.xlu0 0
    %616 = vperm.xlu0 %615, %v326
    %v617 = vpop.permute.xlu0 %616
    %620 = vset.pattern.permute.xlu0 0
    %621 = vperm.xlu0 %620, %v327
    %v622 = vpop.permute.xlu0 %621
    %v624 = vadd.f32 %v596, %v607
    %v625 = vadd.f32 %v597, %v607
    %v626 = vadd.f32 %v598, %v612
    %v627 = vadd.f32 %v599, %v612
    %v628 = vadd.f32 %v600, %v617
    %v629 = vadd.f32 %v601, %v617
    %v630 = vadd.f32 %v602, %v622
    %v631 = vadd.f32 %v603, %v622
    %v632 = vxor.u32 %v624, 2147483648
    %v633 = vxor.u32 %v625, 2147483648
    %v634 = vxor.u32 %v626, 2147483648
    %v635 = vxor.u32 %v627, 2147483648
    %v636 = vxor.u32 %v628, 2147483648
    %v637 = vxor.u32 %v629, 2147483648
    %v638 = vxor.u32 %v630, 2147483648
    %v639 = vxor.u32 %v631, 2147483648
    %v640 = vmul.f32 %v632, 1.442695
    %v641 = vpow.pop %v640
    %v642 = vmul.f32 %v633, 1.442695
    %v643 = vpow.pop %v642
    %v644 = vmul.f32 %v634, 1.442695
    %v645 = vpow.pop %v644
    %v646 = vmul.f32 %v635, 1.442695
    %v647 = vpow.pop %v646
    %v648 = vmul.f32 %v636, 1.442695
    %v649 = vpow.pop %v648
    %v650 = vmul.f32 %v637, 1.442695
    %v651 = vpow.pop %v650
    %v652 = vmul.f32 %v638, 1.442695
    %v653 = vpow.pop %v652
    %v654 = vmul.f32 %v639, 1.442695
    %v655 = vpow.pop %v654
    %v656 = vadd.f32 %v641, 1.0
    %v657 = vadd.f32 %v643, 1.0
    %v658 = vadd.f32 %v645, 1.0
    %v659 = vadd.f32 %v647, 1.0
    %v660 = vadd.f32 %v649, 1.0
    %v661 = vadd.f32 %v651, 1.0
    %v662 = vadd.f32 %v653, 1.0
    %v663 = vadd.f32 %v655, 1.0
    %v664 = vrcp.pop %v656
    %v665 = vmul.f32 %v656, %v664
    %v666 = vsub.f32 1.0, %v665
    %v667 = vmul.f32 %v664, %v666
    %v668 = vadd.f32 %v664, %v667
    %vm669 = vweird.f32 %v656
    %vm670 = vweird.f32 %v664
    %vm671 = vmor %vm669, %vm670
    %v672 = vsel %vm671, %v664, %v668
    %v673 = vand.u32 2147483647, %v656
    %vm674 = vcmp.eq.f32.partialorder %v673, 8.507059e+37
    %v675 = vand.u32 %v656, 2147483648
    %v676 = vor.u32 1.1754944e-38, %v675
    %v677 = vsel %vm674, %v676, %v672
    %v678 = vmul.f32 1.0, %v677
    %v679 = vrcp.pop %v657
    %v680 = vmul.f32 %v657, %v679
    %v681 = vsub.f32 1.0, %v680
    %v682 = vmul.f32 %v679, %v681
    %v683 = vadd.f32 %v679, %v682
    %vm684 = vweird.f32 %v657
    %vm685 = vweird.f32 %v679
    %vm686 = vmor %vm684, %vm685
    %v687 = vsel %vm686, %v679, %v683
    %v688 = vand.u32 2147483647, %v657
    %vm689 = vcmp.eq.f32.partialorder %v688, 8.507059e+37
    %v690 = vand.u32 %v657, 2147483648
    %v691 = vor.u32 1.1754944e-38, %v690
    %v692 = vsel %vm689, %v691, %v687
    %v693 = vmul.f32 1.0, %v692
    %v694 = vrcp.pop %v658
    %v695 = vmul.f32 %v658, %v694
    %v696 = vsub.f32 1.0, %v695
    %v697 = vmul.f32 %v694, %v696
    %v698 = vadd.f32 %v694, %v697
    %vm699 = vweird.f32 %v658
    %vm700 = vweird.f32 %v694
    %vm701 = vmor %vm699, %vm700
    %v702 = vsel %vm701, %v694, %v698
    %v703 = vand.u32 2147483647, %v658
    %vm704 = vcmp.eq.f32.partialorder %v703, 8.507059e+37
    %v705 = vand.u32 %v658, 2147483648
    %v706 = vor.u32 1.1754944e-38, %v705
    %v707 = vsel %vm704, %v706, %v702
    %v708 = vmul.f32 1.0, %v707
    %v709 = vrcp.pop %v659
    %v710 = vmul.f32 %v659, %v709
    %v711 = vsub.f32 1.0, %v710
    %v712 = vmul.f32 %v709, %v711
    %v713 = vadd.f32 %v709, %v712
    %vm714 = vweird.f32 %v659
    %vm715 = vweird.f32 %v709
    %vm716 = vmor %vm714, %vm715
    %v717 = vsel %vm716, %v709, %v713
    %v718 = vand.u32 2147483647, %v659
    %vm719 = vcmp.eq.f32.partialorder %v718, 8.507059e+37
    %v720 = vand.u32 %v659, 2147483648
    %v721 = vor.u32 1.1754944e-38, %v720
    %v722 = vsel %vm719, %v721, %v717
    %v723 = vmul.f32 1.0, %v722
    %v724 = vrcp.pop %v660
    %v725 = vmul.f32 %v660, %v724
    %v726 = vsub.f32 1.0, %v725
    %v727 = vmul.f32 %v724, %v726
    %v728 = vadd.f32 %v724, %v727
    %vm729 = vweird.f32 %v660
    %vm730 = vweird.f32 %v724
    %vm731 = vmor %vm729, %vm730
    %v732 = vsel %vm731, %v724, %v728
    %v733 = vand.u32 2147483647, %v660
    %vm734 = vcmp.eq.f32.partialorder %v733, 8.507059e+37
    %v735 = vand.u32 %v660, 2147483648
    %v736 = vor.u32 1.1754944e-38, %v735
    %v737 = vsel %vm734, %v736, %v732
    %v738 = vmul.f32 1.0, %v737
    %v739 = vrcp.pop %v661
    %v740 = vmul.f32 %v661, %v739
    %v741 = vsub.f32 1.0, %v740
    %v742 = vmul.f32 %v739, %v741
    %v743 = vadd.f32 %v739, %v742
    %vm744 = vweird.f32 %v661
    %vm745 = vweird.f32 %v739
    %vm746 = vmor %vm744, %vm745
    %v747 = vsel %vm746, %v739, %v743
    %v748 = vand.u32 2147483647, %v661
    %vm749 = vcmp.eq.f32.partialorder %v748, 8.507059e+37
    %v750 = vand.u32 %v661, 2147483648
    %v751 = vor.u32 1.1754944e-38, %v750
    %v752 = vsel %vm749, %v751, %v747
    %v753 = vmul.f32 1.0, %v752
    %v754 = vrcp.pop %v662
    %v755 = vmul.f32 %v662, %v754
    %v756 = vsub.f32 1.0, %v755
    %v757 = vmul.f32 %v754, %v756
    %v758 = vadd.f32 %v754, %v757
    %vm759 = vweird.f32 %v662
    %vm760 = vweird.f32 %v754
    %vm761 = vmor %vm759, %vm760
    %v762 = vsel %vm761, %v754, %v758
    %v763 = vand.u32 2147483647, %v662
    %vm764 = vcmp.eq.f32.partialorder %v763, 8.507059e+37
    %v765 = vand.u32 %v662, 2147483648
    %v766 = vor.u32 1.1754944e-38, %v765
    %v767 = vsel %vm764, %v766, %v762
    %v768 = vmul.f32 1.0, %v767
    %v769 = vrcp.pop %v663
    %v770 = vmul.f32 %v663, %v769
    %v771 = vsub.f32 1.0, %v770
    %v772 = vmul.f32 %v769, %v771
    %v773 = vadd.f32 %v769, %v772
    %vm774 = vweird.f32 %v663
    %vm775 = vweird.f32 %v769
    %vm776 = vmor %vm774, %vm775
    %v777 = vsel %vm776, %v769, %v773
    %v778 = vand.u32 2147483647, %v663
    %vm779 = vcmp.eq.f32.partialorder %v778, 8.507059e+37
    %v780 = vand.u32 %v663, 2147483648
    %v781 = vor.u32 1.1754944e-38, %v780
    %v782 = vsel %vm779, %v781, %v777
    %v783 = vmul.f32 1.0, %v782
    %v784 = vmul.f32 %v83, %v678
    %v785 = vmul.f32 %v84, %v693
    %v786 = vmul.f32 %v85, %v708
    %v787 = vmul.f32 %v86, %v723
    %v788 = vmul.f32 %v87, %v738
    %v789 = vmul.f32 %v88, %v753
    %v790 = vmul.f32 %v89, %v768
    %v791 = vmul.f32 %v90, %v783
    %792 = vst [vmem:[#allocation8] sm:$0xff] %v784
    %793 = vst [vmem:[#allocation8 + $0x8] sm:$0xff] %v785
    %794 = vst [vmem:[#allocation8 + $0x10] sm:$0xff] %v786
    %795 = vst [vmem:[#allocation8 + $0x18] sm:$0xff] %v787
    %796 = vst [vmem:[#allocation8 + $0x20] sm:$0xff] %v788
    %797 = vst [vmem:[#allocation8 + $0x28] sm:$0xff] %v789
    %798 = vst [vmem:[#allocation8 + $0x30] sm:$0xff] %v790
    %799 = vst [vmem:[#allocation8 + $0x38] sm:$0xff] %v791
    %800 = vmatpush.msra.mxu0 0.0
    %801 = vmatpush.msra.mxu0 0.0
    %802 = vmatpush.msra.mxu0 0.0
    %803 = vmatpush.msra.mxu0 0.0
    %804 = vmatpush.msra.mxu0 0.0
    %805 = vmatpush.msra.mxu0 0.0
    %806 = vmatpush.msra.mxu0 0.0
    %807 = vmatpush.msra.mxu0 0.0
    %808 = vmatpush.msra.mxu0 0.0
    %809 = vmatpush.msra.mxu0 0.0
    %810 = vmatpush.msra.mxu0 0.0
    %811 = vmatpush.msra.mxu0 0.0
    %812 = vmatpush.msra.mxu0 %v291
    %813 = vmatpush.msra.mxu0 %v289
    %814 = vmatpush.msra.mxu0 %v286
    %815 = vmatpush.msra.mxu0 %v284
    %816 = vmatmul.f32.gmra.mxu0 %v330
    %v817 = vpop.f32.mrf.mxu0
    %v818 = vadd.f32 0.0, %v817
    %819 = vmatmul.f32.gmra.mxu0 %v333
    %v820 = vpop.f32.mrf.mxu0
    %v821 = vadd.f32 0.0, %v820
    %822 = vmatmul.f32.gmra.mxu0 %v336
    %v823 = vpop.f32.mrf.mxu0
    %v824 = vadd.f32 0.0, %v823
    %825 = vmatmul.f32.gmra.mxu0 %v339
    %v826 = vpop.f32.mrf.mxu0
    %v827 = vadd.f32 0.0, %v826
    %828 = vdwg.mxu0
    %v829 = vmul.f32 %v818, %v370
    %v830 = vadd.f32 %v829, 0.0
    %v831 = vmul.f32 %v821, %v373
    %v832 = vadd.f32 %v830, %v831
    %v833 = vmul.f32 %v824, %v376
    %v834 = vadd.f32 %v832, %v833
    %v835 = vmul.f32 %v827, %v379
    %v836 = vadd.f32 %v834, %v835
    %v837 = vpack.c.bf16 %v836, %v836
    %838 = vmatpush.bf16.msra.mxu0 %v445
    %839 = vmatpush.bf16.msra.mxu0 %v443
    %840 = vmatpush.bf16.msra.mxu0 %v441
    %841 = vmatpush.bf16.msra.mxu0 %v439
    %842 = vmatpush.bf16.msra.mxu0 %v437
    %843 = vmatpush.bf16.msra.mxu0 %v435
    %844 = vmatpush.bf16.msra.mxu0 %v433
    %845 = vmatpush.bf16.msra.mxu0 %v431
    %846 = vmatmul.bf16.gmra.mxu0 %v837
    %v847 = vpop.f32.mrf.mxu0
    %v848 = vadd.f32 0.0, %v847
    %v849 = vpop.f32.mrf.mxu0
    %850 = vdwg.mxu0
    %851 = vmatpush.bf16.msra.mxu0 %v446
    %852 = vmatpush.bf16.msra.mxu0 %v444
    %853 = vmatpush.bf16.msra.mxu0 %v442
    %854 = vmatpush.bf16.msra.mxu0 %v440
    %855 = vmatpush.bf16.msra.mxu0 %v438
    %856 = vmatpush.bf16.msra.mxu0 %v436
    %857 = vmatpush.bf16.msra.mxu0 %v434
    %858 = vmatpush.bf16.msra.mxu0 %v432
    %859 = vmatmul.bf16.gmra.mxu0 %v837
    %v860 = vpop.f32.mrf.mxu0
    %v861 = vadd.f32 0.0, %v860
    %v862 = vpop.f32.mrf.mxu0
    %863 = vdwg.mxu0
    %v864 = vmul.f32 %v848, %v492
    %v865 = vmul.f32 %v861, %v492
    %v866 = vadd.f32 %v864, %v499
    %v867 = vadd.f32 %v865, %v499
    %v868 = vmax.f32 %v866, 0.0
    %v869 = vmax.f32 %v867, 0.0
    %870 = vmatpush.msra.mxu0 0.0
    %871 = vmatpush.msra.mxu0 0.0
    %872 = vmatpush.msra.mxu0 0.0
    %873 = vmatpush.msra.mxu0 0.0
    %874 = vmatpush.msra.mxu0 0.0
    %875 = vmatpush.msra.mxu0 0.0
    %876 = vmatpush.msra.mxu0 0.0
    %877 = vmatpush.msra.mxu0 0.0
    %878 = vmatpush.msra.mxu0 0.0
    %879 = vmatpush.msra.mxu0 0.0
    %880 = vmatpush.msra.mxu0 0.0
    %881 = vmatpush.msra.mxu0 0.0
    %882 = vmatpush.msra.mxu0 0.0
    %883 = vmatpush.msra.mxu0 0.0
    %884 = vmatpush.msra.mxu0 0.0
    %885 = vmatpush.msra.mxu0 %v868
    %886 = vmatmul.f32.gmra.mxu0 %v507
    %v887 = vpop.f32.mrf.mxu0
    %v888 = vadd.f32 0.0, %v887
    %889 = vmatmul.f32.gmra.mxu0 %v510
    %v890 = vpop.f32.mrf.mxu0
    %v891 = vadd.f32 0.0, %v890
    %892 = vmatmul.f32.gmra.mxu0 %v513
    %v893 = vpop.f32.mrf.mxu0
    %v894 = vadd.f32 0.0, %v893
    %895 = vmatmul.f32.gmra.mxu0 %v516
    %v896 = vpop.f32.mrf.mxu0
    %v897 = vadd.f32 0.0, %v896
    %898 = vdwg.mxu0
    %899 = vmatpush.msra.mxu0 0.0
    %900 = vmatpush.msra.mxu0 0.0
    %901 = vmatpush.msra.mxu0 0.0
    %902 = vmatpush.msra.mxu0 0.0
    %903 = vmatpush.msra.mxu0 0.0
    %904 = vmatpush.msra.mxu0 0.0
    %905 = vmatpush.msra.mxu0 0.0
    %906 = vmatpush.msra.mxu0 0.0
    %907 = vmatpush.msra.mxu0 0.0
    %908 = vmatpush.msra.mxu0 0.0
    %909 = vmatpush.msra.mxu0 0.0
    %910 = vmatpush.msra.mxu0 0.0
    %911 = vmatpush.msra.mxu0 0.0
    %912 = vmatpush.msra.mxu0 0.0
    %913 = vmatpush.msra.mxu0 0.0
    %914 = vmatpush.msra.mxu0 %v869
    %915 = vmatmul.f32.gmra.mxu0 %v507
    %v916 = vpop.f32.mrf.mxu0
    %v917 = vadd.f32 0.0, %v916
    %918 = vmatmul.f32.gmra.mxu0 %v510
    %v919 = vpop.f32.mrf.mxu0
    %v920 = vadd.f32 0.0, %v919
    %921 = vmatmul.f32.gmra.mxu0 %v513
    %v922 = vpop.f32.mrf.mxu0
    %v923 = vadd.f32 0.0, %v922
    %924 = vmatmul.f32.gmra.mxu0 %v516
    %v925 = vpop.f32.mrf.mxu0
    %v926 = vadd.f32 0.0, %v925
    %927 = vdwg.mxu0
    %v928 = vmul.f32 %v888, %v579
    %v929 = vmul.f32 %v917, %v579
    %v930 = vmul.f32 %v891, %v584
    %v931 = vmul.f32 %v920, %v584
    %v932 = vmul.f32 %v894, %v589
    %v933 = vmul.f32 %v923, %v589
    %v934 = vmul.f32 %v897, %v594
    %v935 = vmul.f32 %v926, %v594
    %v936 = vadd.f32 %v928, %v607
    %v937 = vadd.f32 %v929, %v607
    %v938 = vadd.f32 %v930, %v612
    %v939 = vadd.f32 %v931, %v612
    %v940 = vadd.f32 %v932, %v617
    %v941 = vadd.f32 %v933, %v617
    %v942 = vadd.f32 %v934, %v622
    %v943 = vadd.f32 %v935, %v622
    %v944 = vxor.u32 %v936, 2147483648
    %v945 = vxor.u32 %v937, 2147483648
    %v946 = vxor.u32 %v938, 2147483648
    %v947 = vxor.u32 %v939, 2147483648
    %v948 = vxor.u32 %v940, 2147483648
    %v949 = vxor.u32 %v941, 2147483648
    %v950 = vxor.u32 %v942, 2147483648
    %v951 = vxor.u32 %v943, 2147483648
    %v952 = vmul.f32 %v944, 1.442695
    %v953 = vpow.pop %v952
    %v954 = vmul.f32 %v945, 1.442695
    %v955 = vpow.pop %v954
    %v956 = vmul.f32 %v946, 1.442695
    %v957 = vpow.pop %v956
    %v958 = vmul.f32 %v947, 1.442695
    %v959 = vpow.pop %v958
    %v960 = vmul.f32 %v948, 1.442695
    %v961 = vpow.pop %v960
    %v962 = vmul.f32 %v949, 1.442695
    %v963 = vpow.pop %v962
    %v964 = vmul.f32 %v950, 1.442695
    %v965 = vpow.pop %v964
    %v966 = vmul.f32 %v951, 1.442695
    %v967 = vpow.pop %v966
    %v968 = vadd.f32 %v953, 1.0
    %v969 = vadd.f32 %v955, 1.0
    %v970 = vadd.f32 %v957, 1.0
    %v971 = vadd.f32 %v959, 1.0
    %v972 = vadd.f32 %v961, 1.0
    %v973 = vadd.f32 %v963, 1.0
    %v974 = vadd.f32 %v965, 1.0
    %v975 = vadd.f32 %v967, 1.0
    %v976 = vrcp.pop %v968
    %v977 = vmul.f32 %v968, %v976
    %v978 = vsub.f32 1.0, %v977
    %v979 = vmul.f32 %v976, %v978
    %v980 = vadd.f32 %v976, %v979
    %vm981 = vweird.f32 %v968
    %vm982 = vweird.f32 %v976
    %vm983 = vmor %vm981, %vm982
    %v984 = vsel %vm983, %v976, %v980
    %v985 = vand.u32 2147483647, %v968
    %vm986 = vcmp.eq.f32.partialorder %v985, 8.507059e+37
    %v987 = vand.u32 %v968, 2147483648
    %v988 = vor.u32 1.1754944e-38, %v987
    %v989 = vsel %vm986, %v988, %v984
    %v990 = vmul.f32 1.0, %v989
    %v991 = vrcp.pop %v969
    %v992 = vmul.f32 %v969, %v991
    %v993 = vsub.f32 1.0, %v992
    %v994 = vmul.f32 %v991, %v993
    %v995 = vadd.f32 %v991, %v994
    %vm996 = vweird.f32 %v969
    %vm997 = vweird.f32 %v991
    %vm998 = vmor %vm996, %vm997
    %v999 = vsel %vm998, %v991, %v995
    %v1000 = vand.u32 2147483647, %v969
    %vm1001 = vcmp.eq.f32.partialorder %v1000, 8.507059e+37
    %v1002 = vand.u32 %v969, 2147483648
    %v1003 = vor.u32 1.1754944e-38, %v1002
    %v1004 = vsel %vm1001, %v1003, %v999
    %v1005 = vmul.f32 1.0, %v1004
    %v1006 = vrcp.pop %v970
    %v1007 = vmul.f32 %v970, %v1006
    %v1008 = vsub.f32 1.0, %v1007
    %v1009 = vmul.f32 %v1006, %v1008
    %v1010 = vadd.f32 %v1006, %v1009
    %vm1011 = vweird.f32 %v970
    %vm1012 = vweird.f32 %v1006
    %vm1013 = vmor %vm1011, %vm1012
    %v1014 = vsel %vm1013, %v1006, %v1010
    %v1015 = vand.u32 2147483647, %v970
    %vm1016 = vcmp.eq.f32.partialorder %v1015, 8.507059e+37
    %v1017 = vand.u32 %v970, 2147483648
    %v1018 = vor.u32 1.1754944e-38, %v1017
    %v1019 = vsel %vm1016, %v1018, %v1014
    %v1020 = vmul.f32 1.0, %v1019
    %v1021 = vrcp.pop %v971
    %v1022 = vmul.f32 %v971, %v1021
    %v1023 = vsub.f32 1.0, %v1022
    %v1024 = vmul.f32 %v1021, %v1023
    %v1025 = vadd.f32 %v1021, %v1024
    %vm1026 = vweird.f32 %v971
    %vm1027 = vweird.f32 %v1021
    %vm1028 = vmor %vm1026, %vm1027
    %v1029 = vsel %vm1028, %v1021, %v1025
    %v1030 = vand.u32 2147483647, %v971
    %vm1031 = vcmp.eq.f32.partialorder %v1030, 8.507059e+37
    %v1032 = vand.u32 %v971, 2147483648
    %v1033 = vor.u32 1.1754944e-38, %v1032
    %v1034 = vsel %vm1031, %v1033, %v1029
    %v1035 = vmul.f32 1.0, %v1034
    %v1036 = vrcp.pop %v972
    %v1037 = vmul.f32 %v972, %v1036
    %v1038 = vsub.f32 1.0, %v1037
    %v1039 = vmul.f32 %v1036, %v1038
    %v1040 = vadd.f32 %v1036, %v1039
    %vm1041 = vweird.f32 %v972
    %vm1042 = vweird.f32 %v1036
    %vm1043 = vmor %vm1041, %vm1042
    %v1044 = vsel %vm1043, %v1036, %v1040
    %v1045 = vand.u32 2147483647, %v972
    %vm1046 = vcmp.eq.f32.partialorder %v1045, 8.507059e+37
    %v1047 = vand.u32 %v972, 2147483648
    %v1048 = vor.u32 1.1754944e-38, %v1047
    %v1049 = vsel %vm1046, %v1048, %v1044
    %v1050 = vmul.f32 1.0, %v1049
    %v1051 = vrcp.pop %v973
    %v1052 = vmul.f32 %v973, %v1051
    %v1053 = vsub.f32 1.0, %v1052
    %v1054 = vmul.f32 %v1051, %v1053
    %v1055 = vadd.f32 %v1051, %v1054
    %vm1056 = vweird.f32 %v973
    %vm1057 = vweird.f32 %v1051
    %vm1058 = vmor %vm1056, %vm1057
    %v1059 = vsel %vm1058, %v1051, %v1055
    %v1060 = vand.u32 2147483647, %v973
    %vm1061 = vcmp.eq.f32.partialorder %v1060, 8.507059e+37
    %v1062 = vand.u32 %v973, 2147483648
    %v1063 = vor.u32 1.1754944e-38, %v1062
    %v1064 = vsel %vm1061, %v1063, %v1059
    %v1065 = vmul.f32 1.0, %v1064
    %v1066 = vrcp.pop %v974
    %v1067 = vmul.f32 %v974, %v1066
    %v1068 = vsub.f32 1.0, %v1067
    %v1069 = vmul.f32 %v1066, %v1068
    %v1070 = vadd.f32 %v1066, %v1069
    %vm1071 = vweird.f32 %v974
    %vm1072 = vweird.f32 %v1066
    %vm1073 = vmor %vm1071, %vm1072
    %v1074 = vsel %vm1073, %v1066, %v1070
    %v1075 = vand.u32 2147483647, %v974
    %vm1076 = vcmp.eq.f32.partialorder %v1075, 8.507059e+37
    %v1077 = vand.u32 %v974, 2147483648
    %v1078 = vor.u32 1.1754944e-38, %v1077
    %v1079 = vsel %vm1076, %v1078, %v1074
    %v1080 = vmul.f32 1.0, %v1079
    %v1081 = vrcp.pop %v975
    %v1082 = vmul.f32 %v975, %v1081
    %v1083 = vsub.f32 1.0, %v1082
    %v1084 = vmul.f32 %v1081, %v1083
    %v1085 = vadd.f32 %v1081, %v1084
    %vm1086 = vweird.f32 %v975
    %vm1087 = vweird.f32 %v1081
    %vm1088 = vmor %vm1086, %vm1087
    %v1089 = vsel %vm1088, %v1081, %v1085
    %v1090 = vand.u32 2147483647, %v975
    %vm1091 = vcmp.eq.f32.partialorder %v1090, 8.507059e+37
    %v1092 = vand.u32 %v975, 2147483648
    %v1093 = vor.u32 1.1754944e-38, %v1092
    %v1094 = vsel %vm1091, %v1093, %v1089
    %v1095 = vmul.f32 1.0, %v1094
    %v1096 = vmul.f32 %v91, %v990
    %v1097 = vmul.f32 %v92, %v1005
    %v1098 = vmul.f32 %v93, %v1020
    %v1099 = vmul.f32 %v94, %v1035
    %v1100 = vmul.f32 %v95, %v1050
    %v1101 = vmul.f32 %v96, %v1065
    %v1102 = vmul.f32 %v97, %v1080
    %v1103 = vmul.f32 %v98, %v1095
    %s1104 = scalar_lea.vmem [#allocation8], 64
    %1105 = vst [vmem:[%s1104] sm:$0xff] %v1096
    %1106 = vst [vmem:[%s1104 + $0x8] sm:$0xff] %v1097
    %1107 = vst [vmem:[%s1104 + $0x10] sm:$0xff] %v1098
    %1108 = vst [vmem:[%s1104 + $0x18] sm:$0xff] %v1099
    %1109 = vst [vmem:[%s1104 + $0x20] sm:$0xff] %v1100
    %1110 = vst [vmem:[%s1104 + $0x28] sm:$0xff] %v1101
    %1111 = vst [vmem:[%s1104 + $0x30] sm:$0xff] %v1102
    %1112 = vst [vmem:[%s1104 + $0x38] sm:$0xff] %v1103
    // Predicated region
    $region54: #{tpu_custom_call.1} parent=1 // pred_check
      _
    $region55: #{tpu_custom_call.1} parent=1 // pred_check_branch
      %1114 = sbr.rel (0) target = $region57
    $region56: #{tpu_custom_call.1} parent=1 // pred_region
      %1116 = vsyncadd [#allocation4], 0
      %s1117 = sshll.u32 [#allocation8], 4
      %s1118 = int_to_ptr.vmem [resolvable:$true] %s1117
      %s1119 = sshll.u32 %s10, 4
      %s1120 = int_to_ptr.hbm [resolvable:$true] %s1119
      %1125 = dma.vmem_to_hbm [thread:$0]  %s1118, 2048, %s1120, [#allocation4], 256, 256, 16
    $region57: #{tpu_custom_call.1} parent=1 // pred_fallthru
      _
    // Predicated region
    $region58: #{tpu_custom_call.1} parent=1 // pred_check
      _
    $region59: #{tpu_custom_call.1} parent=1 // pred_check_branch
      %1127 = sbr.rel (0) target = $region61
    $region60: #{tpu_custom_call.1} parent=1 // pred_region
      %1129 = dma.done [#allocation4], 2048
    $region61: #{tpu_custom_call.1} parent=1 // pred_fallthru
      _
    %1130 = vsyncpa [#allocation3], 1
    %1131 = vsyncpa [#allocation6], 1
    %1132 = vsyncpa [#allocation4], 1

</llo_original>
